<compile_context>
chip_gen: v6e
topology: v6e:2x2x1
jax: 0.10.0
libtpu: 0.0.40
codegen_flags: <defaults>
</compile_context>

<pallas_src>
import functools

import jax
import jax.numpy as jnp
from jax.experimental import pallas as pl
from jax.experimental.pallas import tpu as pltpu

_LANE = 128
_SUBLANE = 8
_CHUNK_ROWS = 256                      # strip-mine chunk inside the kernel
_MAX_TIME_TILE = 8192                  # rows per grid step (upper bound)
_VMEM_BUFFER_BUDGET = 12 * 1024 * 1024  # double-buffered input blocks budget
_VMEM_LIMIT = 32 * 1024 * 1024


def _round_up(x, m):
    return ((x + m - 1) // m) * m


def _round_down(x, m):
    return (x // m) * m


def _sq_err_partial_kernel(p_ref, t_ref, out_ref, *, time_tile, chunk, crop,
                           n_rows, cast_dtype, needs_mask):
    """Per-block partial sums of (p - t)^2, folded into a (8, F) f32 slab.

    p_ref:  (time_tile, F)            prediction block, native dtype
    t_ref:  (time_tile, 1) or (time_tile, F)  target block, native dtype
    out_ref:(8, F) f32                partial sums for this block
    Rows with global time index outside [crop, n_rows) are masked to zero;
    this covers both the warmup/latency crop and the ragged last block.
    """
    f = p_ref.shape[-1]
    row0 = pl.program_id(0) * time_tile
    nchunks = time_tile // chunk

    def body(c, acc):
        r0 = pl.multiple_of(c * chunk, _SUBLANE)
        p = p_ref[pl.ds(r0, chunk), :].astype(jnp.float32)
        # Match torch's `target.to(prediction.dtype)` rounding, then widen.
        t = t_ref[pl.ds(r0, chunk), :].astype(cast_dtype).astype(jnp.float32)
        d = p - t                       # lane-broadcast if target block is (chunk, 1)
        sq = d * d
        if needs_mask:
            rid = row0 + r0 + jax.lax.broadcasted_iota(jnp.int32, (chunk, f), 0)
            sq = jnp.where((rid >= crop) & (rid < n_rows), sq, 0.0)
        # Fold sublane groups -> (8, F).  Pure VPU adds, no cross-lane reduce.
        return acc + sq.reshape(chunk // _SUBLANE, _SUBLANE, f).sum(axis=0)

    acc = jax.lax.fori_loop(0, nchunks, body,
                            jnp.zeros((_SUBLANE, f), jnp.float32),
                            unroll=nchunks <= 8)
    out_ref[...] = acc


def _choose_time_tile(n_rows, f, p_itemsize, t_lanes, t_itemsize):
    """Pick the time tile so double-buffered (lane-padded) inputs fit budget."""
    f_pad = _round_up(f, _LANE)
    t_pad = _round_up(t_lanes, _LANE)
    per_row = 2 * f_pad * p_itemsize + 2 * t_pad * t_itemsize  # double-buffered
    max_rows = max(_SUBLANE, _VMEM_BUFFER_BUDGET // per_row)
    tile = min(max_rows, _MAX_TIME_TILE, _round_up(n_rows, _SUBLANE))
    if tile >= _CHUNK_ROWS:
        tile = _round_down(tile, _CHUNK_ROWS)
        chunk = _CHUNK_ROWS
    else:
        tile = max(_round_down(tile, _SUBLANE), _SUBLANE)
        chunk = tile
    return tile, chunk


def _sq_err_partials(p2, t2, *, crop, cast_dtype):
    """Pallas call: p2 is (T, F); t2 is (T, 1) (un-broadcast) or (T, F)."""
    n_rows, f = p2.shape
    t_lanes = t2.shape[1]
    time_tile, chunk = _choose_time_tile(
        n_rows, f, p2.dtype.itemsize, t_lanes, t2.dtype.itemsize)
    num_blocks = -(-n_rows // time_tile)
    needs_mask = (crop > 0) or (n_rows % time_tile != 0)
    kernel = functools.partial(
        _sq_err_partial_kernel, time_tile=time_tile, chunk=chunk, crop=crop,
        n_rows=n_rows, cast_dtype=cast_dtype, needs_mask=needs_mask)
    n_elems = n_rows * f
    return pl.pallas_call(
        kernel,
        out_shape=jax.ShapeDtypeStruct((num_blocks * _SUBLANE, f), jnp.float32),
        grid=(num_blocks,),
        in_specs=[
            pl.BlockSpec((time_tile, f), lambda i: (i, 0)),
            pl.BlockSpec((time_tile, t_lanes), lambda i: (i, 0)),
        ],
        out_specs=pl.BlockSpec((_SUBLANE, f), lambda i: (i, 0)),
        compiler_params=pltpu.CompilerParams(
            dimension_semantics=("parallel",),
            vmem_limit_bytes=_VMEM_LIMIT,
        ),
        cost_estimate=pl.CostEstimate(
            flops=6 * n_elems,
            transcendentals=0,
            bytes_accessed=n_elems * p2.dtype.itemsize
            + n_rows * t_lanes * t2.dtype.itemsize
            + num_blocks * _SUBLANE * f * 4,
        ),
    )(p2, t2)


def _to_4d(x):
    """photontorch's `while ndim < 4: x = x[:, None]` (insert dims at axis 1)."""
    while x.ndim < 4:
        x = x[:, None]
    return x


@functools.partial(jax.jit, static_argnames=("crop",))
def _mse_loss_impl(prediction, target, crop):
    """Broadcast (lazily), crop (by masking) and compute the MSE."""
    p4 = _to_4d(jnp.asarray(prediction))
    t4 = _to_4d(jnp.asarray(target))
    bshape = jnp.broadcast_shapes(p4.shape, t4.shape)
    n_rows = int(bshape[0])
    f = 1
    for d in bshape[1:]:
        f *= int(d)
    n_valid = max(n_rows - crop, 0) * f
    if n_valid == 0:
        # mean over an empty cropped region -> nan (matches torch .mean() of empty)
        return jnp.float32(jnp.nan)

    min_block_bytes = 2 * _SUBLANE * _round_up(f, _LANE) * p4.dtype.itemsize
    if n_rows < _SUBLANE or min_block_bytes > _VMEM_BUFFER_BUDGET:
        # Tiny / degenerate problem: plain JAX keeps exact semantics.
        p = jnp.broadcast_to(p4, bshape).astype(jnp.float32)
        t = jnp.broadcast_to(t4.astype(p4.dtype), bshape).astype(jnp.float32)
        return jnp.sum((p[crop:] - t[crop:]) ** 2) / jnp.float32(n_valid)

    # Prediction -> (T, F). Free reshape when prediction already has the full shape.
    if tuple(p4.shape) == tuple(bshape):
        p2 = p4.reshape(n_rows, f)
    else:
        # TODO(synk): rare path; materializes the broadcast prediction.
        p2 = jnp.broadcast_to(p4, bshape).reshape(n_rows, f)

    # Target: keep un-broadcast (T, 1) when it only varies along time.
    if t4.ndim == len(bshape) and all(int(d) == 1 for d in t4.shape[1:]):
        t2 = t4.reshape(t4.shape[0], 1)
        if int(t4.shape[0]) != n_rows:
            t2 = jnp.broadcast_to(t2, (n_rows, 1))   # tiny (time broadcast only)
    else:
        # TODO(synk): target varies over non-time dims; materialize its broadcast.
        t2 = jnp.broadcast_to(t4, bshape).reshape(n_rows, f)

    partials = _sq_err_partials(p2, t2, crop=crop, cast_dtype=p4.dtype)
    return jnp.sum(partials) / jnp.float32(n_valid)


class PallasLoss:
    """Pallas port of photontorch.nn._Loss (with the canonical MSE forward)."""

    def __init__(self, latency=0.0, warmup=0, bitrate=40e9, samplerate=160e9):
        self.bitrate = float(bitrate)
        self.samplerate = float(samplerate)
        self.latency = float(latency)
        self.warmup = int(warmup + 0.5)

    def forward(self, prediction, target, latency=None, warmup=None,
                bitrate=None, samplerate=None):
        bitrate = self.bitrate if bitrate is None else float(bitrate)
        samplerate = self.samplerate if samplerate is None else float(samplerate)
        latency = self.latency if latency is None else float(latency)
        warmup = self.warmup if warmup is None else int(warmup + 0.5)

        l = int(latency * samplerate / bitrate + 0.5)
        w = int(int(warmup + 0.5) * samplerate / bitrate + 0.5)
        if w < 0:
            raise ValueError(
                "warmup should be a positive integer (number of warmup bits)")
        if w + l < 0:
            raise ValueError(
                "please add more warmup bits for negative latency %.2f" % latency)

        return _mse_loss_impl(jnp.asarray(prediction), jnp.asarray(target),
                              crop=w + l)

    __call__ = forward


if __name__ == "__main__":
    key = jax.random.PRNGKey(0)
    kp, kt, kn = jax.random.split(key, 3)

    # (# timesteps, # wavelengths, # readouts, # batches)
    timesteps, wavelengths, readouts, batches = 300, 2, 2, 2
    prediction = jax.random.uniform(
        kp, (timesteps, wavelengths, readouts, batches), dtype=jnp.float32)
    # 1-D bitstream target (the common photontorch case): stays un-broadcast in HBM.
    target_bits = (jax.random.uniform(kt, (timesteps,), dtype=jnp.float32) > 0.5
                   ).astype(jnp.float32)

    loss_fn = PallasLoss(latency=0.5, warmup=1, bitrate=40e9, samplerate=160e9)

    # Reference crop
    l = int(0.5 * 160e9 / 40e9 + 0.5)
    w = int(1 * 160e9 / 40e9 + 0.5)
    crop = w + l

    # Case 1: broadcast target (fast path: target kept as (T, 1) in HBM)
    loss1 = jax.block_until_ready(loss_fn(prediction, target_bits))
    t_full = jnp.broadcast_to(target_bits[:, None, None, None], prediction.shape)
    ref1 = jnp.mean((prediction[crop:] - t_full[crop:]) ** 2)
    assert jnp.allclose(loss1, ref1, rtol=1e-5, atol=1e-6), (loss1, ref1)

    # Case 2: full-shape target (per-element target path)
    target_full = t_full + 0.01 * jax.random.normal(
        kn, prediction.shape, dtype=jnp.float32)
    loss2 = jax.block_until_ready(loss_fn(prediction, target_full))
    ref2 = jnp.mean((prediction[crop:] - target_full[crop:]) ** 2)
    assert jnp.allclose(loss2, ref2, rtol=1e-5, atol=1e-6), (loss2, ref2)

    print("KERNEL_OK")
</pallas_src>

<mosaic_0001>
module attributes {stable_mosaic.version = 11 : i64} {
  func.func @_sq_err_partial_kernel(%arg0: i32, %arg1: memref<256x8xf32, #tpu.memory_space<vmem>>, %arg2: memref<256x1xf32, #tpu.memory_space<vmem>>, %arg3: memref<8x8xf32, #tpu.memory_space<vmem>>) attributes {dimension_semantics = [#tpu.dimension_semantics<parallel>], iteration_bounds = array<i64: 2>, scalar_prefetch = 0 : i64, scratch_operands = 0 : i64, tpu.core_type = #tpu.core_type<tc>, window_params = [{transform_indices = @transform_0, window_bounds = array<i64: 256, 8>}, {transform_indices = @transform_1, window_bounds = array<i64: 256, 1>}, {transform_indices = @transform_2, window_bounds = array<i64: 8, 8>}]} {
    %c256_i32 = arith.constant 256 : i32
    %0 = arith.muli %arg0, %c256_i32 : i32
    %cst = arith.constant 0.000000e+00 : f32
    %1 = vector.broadcast %cst : f32 to vector<8x8xf32>
    %c0_i32 = arith.constant 0 : i32
    %c256_i32_0 = arith.constant 256 : i32
    %2 = arith.muli %c0_i32, %c256_i32_0 : i32
    %3 = tpu.assume_multiple %2, 8 : i32
    %4 = arith.index_cast %3 : i32 to index
    %c0 = arith.constant 0 : index
    %5 = vector.load %arg1[%4, %c0] : memref<256x8xf32, #tpu.memory_space<vmem>>, vector<256x8xf32>
    %6 = arith.index_cast %3 : i32 to index
    %c0_1 = arith.constant 0 : index
    %7 = vector.load %arg2[%6, %c0_1] : memref<256x1xf32, #tpu.memory_space<vmem>>, vector<256x1xf32>
    %8 = vector.broadcast %7 : vector<256x1xf32> to vector<256x8xf32>
    %9 = arith.subf %5, %8 : vector<256x8xf32>
    %10 = arith.mulf %9, %9 : vector<256x8xf32>
    %11 = arith.addi %0, %3 : i32
    %12 = tpu.iota {dimensions = array<i32: 0>} : vector<256x8xi32>
    %13 = vector.broadcast %11 : i32 to vector<256x8xi32>
    %14 = arith.addi %13, %12 : vector<256x8xi32>
    %c6_i32 = arith.constant 6 : i32
    %15 = vector.broadcast %c6_i32 : i32 to vector<256x8xi32>
    %16 = arith.cmpi sge, %14, %15 : vector<256x8xi32>
    %c300_i32 = arith.constant 300 : i32
    %17 = vector.broadcast %c300_i32 : i32 to vector<256x8xi32>
    %18 = arith.cmpi slt, %14, %17 : vector<256x8xi32>
    %19 = arith.andi %16, %18 : vector<256x8xi1>
    %cst_2 = arith.constant 0.000000e+00 : f32
    %20 = vector.broadcast %cst_2 : f32 to vector<256x8xf32>
    %21 = arith.select %19, %10, %20 : vector<256x8xi1>, vector<256x8xf32>
    %22 = vector.shape_cast %21 : vector<256x8xf32> to vector<32x8x8xf32>
    %cst_3 = arith.constant dense<0.000000e+00> : vector<8x8xf32>
    %23 = vector.multi_reduction <add>, %22, %cst_3 [0] : vector<32x8x8xf32> to vector<8x8xf32>
    %24 = arith.addf %1, %23 : vector<8x8xf32>
    %c1_i32 = arith.constant 1 : i32
    %c0_4 = arith.constant 0 : index
    %c0_5 = arith.constant 0 : index
    %25 = vector.load %arg3[%c0_4, %c0_5] : memref<8x8xf32, #tpu.memory_space<vmem>>, vector<8x8xf32>
    tpu.vector_store %arg3[%c0_4, %c0_5], %24 {strides = array<i32>} : memref<8x8xf32, #tpu.memory_space<vmem>>, vector<8x8xf32>,
    return
  }
  func.func @transform_0(%arg0: i32) -> (i32, i32) {
    %c0_i32 = arith.constant 0 : i32
    %c0_i32_0 = arith.constant 0 : i32
    return %arg0, %c0_i32 : i32, i32
  }
  func.func @transform_1(%arg0: i32) -> (i32, i32) {
    %c0_i32 = arith.constant 0 : i32
    %c0_i32_0 = arith.constant 0 : i32
    return %arg0, %c0_i32 : i32, i32
  }
  func.func @transform_2(%arg0: i32) -> (i32, i32) {
    %c0_i32 = arith.constant 0 : i32
    %c0_i32_0 = arith.constant 0 : i32
    return %arg0, %c0_i32 : i32, i32
  }
}

</mosaic_0001>

<llo_original>
// kernel: _mse_loss_impl.1
$region0: #{_mse_loss_impl.1}
  #allocation0 [shape = 'u32[]', space=smem, size = 0x4, offset = 0x4, fixed_abs, tag = 'smem constant byte address 0x4 - core index']
  #allocation1 [shape = 'u32[144,128]{1,0:T(1,128)}', space=vmem, size = 0x12000, scoped, tag = 'internal scratch']
  %s0 = inlined_call_operand.vmem [shape: f32[300,8], index: 0, kind: input, shape index: {}]
  %s1 = inlined_call_operand.vmem [shape: f32[300,1], index: 1, kind: input, shape index: {}]
  %s2 = inlined_call_operand.vmem [shape: f32[16,8], index: 2, kind: output, shape index: {}]
  %s3 = sld [smem:[#allocation0]]
  $region41: #{_mse_loss_impl.1} parent=0
    _
  %s5 = ssub.s32 1, %s3
  %s6 = scalar_select 0, %s5, %s3
  loop: start=0, step=1, limit=4
  $region2: #{_mse_loss_impl.1} parent=0 // loop_pre_header
    _
  $region3: #{_mse_loss_impl.1} parent=0 // loop_header
    %s8 = sphi 0, %s12
    %p9 = scmp.ge.s32.totalorder %s8, 4
    %s18 = sphi 0, %s20
    %s21 = sphi 0, %s18
    %s22 = sphi 0, %s21
    %s38 = sphi 0, %s22
    %s44 = sphi 0, %s46
    %s47 = sphi 0, %s44
    %s48 = sphi 0, %s47
    %s64 = sphi 0, %s48
    %s70 = sphi 0, %s72
    %s73 = sphi 0, %s70
    %s74 = sphi 0, %s73
    %s90 = sphi 0, %s74
  $region4: #{_mse_loss_impl.1} parent=0 // loop_header_branch
    %11 = sbr.rel (%p9) target = $region8
  $region5: #{_mse_loss_impl.1} parent=0 // loop_body
    %s13 = ssub.s32 %s8, 1
    %s14 = ssub.s32 %s8, 2
    %s15 = sadd.s32 %s8, 1
    %s16 = ssub.s32 %s8, %s15
    %p17 = scmp.eq.s32.totalorder %s16, 0
    %s19 = sadd.s32 %s18, 1
    %s20 = scalar_select %p17, %s18, %s19
    %p23 = pneg %p17
    %p24 = scmp.eq.s32.totalorder %s8, 1
    %p25 = por %p23, %p24
    %p26 = scmp.ne.s32.totalorder %s18, %s21
    %p27 = scmp.eq.s32.totalorder %s8, 0
    %p28 = por %p26, %p27
    %p29 = scmp.ne.s32.totalorder %s18, %s21
    %p30 = scmp.eq.s32.totalorder %s13, 1
    %p31 = por %p29, %p30
    %p32 = scmp.ne.s32.totalorder %s21, %s22
    %p33 = scmp.eq.s32.totalorder %s13, 0
    %p34 = por %p32, %p33
    %p35 = scmp.ne.s32.totalorder %s21, %s22
    %p36 = scmp.eq.s32.totalorder %s14, 1
    %p37 = por %p35, %p36
    %p39 = scmp.ne.s32.totalorder %s22, %s38
    %p40 = scmp.eq.s32.totalorder %s14, 0
    %p41 = por %p39, %p40
    %s42 = ssub.s32 %s8, %s15
    %p43 = scmp.eq.s32.totalorder %s42, 0
    %s45 = sadd.s32 %s44, 1
    %s46 = scalar_select %p43, %s44, %s45
    %p49 = pneg %p43
    %p50 = scmp.eq.s32.totalorder %s8, 1
    %p51 = por %p49, %p50
    %p52 = scmp.ne.s32.totalorder %s44, %s47
    %p53 = scmp.eq.s32.totalorder %s8, 0
    %p54 = por %p52, %p53
    %p55 = scmp.ne.s32.totalorder %s44, %s47
    %p56 = scmp.eq.s32.totalorder %s13, 1
    %p57 = por %p55, %p56
    %p58 = scmp.ne.s32.totalorder %s47, %s48
    %p59 = scmp.eq.s32.totalorder %s13, 0
    %p60 = por %p58, %p59
    %p61 = scmp.ne.s32.totalorder %s47, %s48
    %p62 = scmp.eq.s32.totalorder %s14, 1
    %p63 = por %p61, %p62
    %p65 = scmp.ne.s32.totalorder %s48, %s64
    %p66 = scmp.eq.s32.totalorder %s14, 0
    %p67 = por %p65, %p66
    %s68 = ssub.s32 %s8, %s15
    %p69 = scmp.eq.s32.totalorder %s68, 0
    %s71 = sadd.s32 %s70, 1
    %s72 = scalar_select %p69, %s70, %s71
    %p75 = pneg %p69
    %p76 = scmp.eq.s32.totalorder %s8, 1
    %p77 = por %p75, %p76
    %p78 = scmp.ne.s32.totalorder %s70, %s73
    %p79 = scmp.eq.s32.totalorder %s8, 0
    %p80 = por %p78, %p79
    %p81 = scmp.ne.s32.totalorder %s70, %s73
    %p82 = scmp.eq.s32.totalorder %s13, 1
    %p83 = por %p81, %p82
    %p84 = scmp.ne.s32.totalorder %s73, %s74
    %p85 = scmp.eq.s32.totalorder %s13, 0
    %p86 = por %p84, %p85
    %p87 = scmp.ne.s32.totalorder %s73, %s74
    %p88 = scmp.eq.s32.totalorder %s14, 1
    %p89 = por %p87, %p88
    %p91 = scmp.ne.s32.totalorder %s74, %s90
    %p92 = scmp.eq.s32.totalorder %s14, 0
    %p93 = por %p91, %p92
    %p94 = scmp.le.s32.totalorder 1, %s8
    %p95 = scmp.lt.s32.totalorder %s8, 3
    %p96 = pnand %p94, %p95
    %p97 = pneg %p96
    // Predicated region
    $region9: #{_mse_loss_impl.1} parent=5 // pred_check
      _
    $region10: #{_mse_loss_impl.1} parent=5 // pred_check_branch
      %99 = sbr.rel (%p96) target = $region12
    $region11: #{_mse_loss_impl.1} parent=5 // pred_region
      %s100 = ssub.s32 %s8, 1
    $region12: #{_mse_loss_impl.1} parent=5 // pred_fallthru
      _
    %p101 = scmp.lt.s32.totalorder %s8, 2
    // Predicated region
    $region13: #{_mse_loss_impl.1} parent=5 // pred_check
      %p102 = pneg %p101
    $region14: #{_mse_loss_impl.1} parent=5 // pred_check_branch
      %104 = sbr.rel (%p102) target = $region16
    $region15: #{_mse_loss_impl.1} parent=5 // pred_region
      // Predicated region
      $region17: #{_mse_loss_impl.1} parent=15 // pred_check
        %p105 = pneg %p28
      $region18: #{_mse_loss_impl.1} parent=15 // pred_check_branch
        %107 = sbr.rel (%p105) target = $region20
      $region19: #{_mse_loss_impl.1} parent=15 // pred_region
        %s108 = smul.u32 32, %s8
        %s109 = ssub.s32 38, %s108
        %p110 = scmp.lt.s32.totalorder %s109, 32
        %s111 = scalar_select %p110, %s109, 32
        %s112 = smul.u32 128, %s111
        %p113 = scmp.lt.s32.totalorder %s108, 37
        %s114 = scalar_select %p113, %s108, 37
        %s115 = smul.addr %s114, 8
        %s116 = scalar_lea.vmem %s0, %s115
        %s117 = smul.u32 32, %s8
        %s118 = ssub.s32 38, %s117
        %p119 = scmp.lt.s32.totalorder %s118, 32
        %s120 = scalar_select %p119, %s118, 32
        %s121 = smul.u32 128, %s120
      $region20: #{_mse_loss_impl.1} parent=15 // pred_fallthru
        _
      // Predicated region
      $region21: #{_mse_loss_impl.1} parent=15 // pred_check
        %p122 = pneg %p54
      $region22: #{_mse_loss_impl.1} parent=15 // pred_check_branch
        %124 = sbr.rel (%p122) target = $region24
      $region23: #{_mse_loss_impl.1} parent=15 // pred_region
        %s125 = smul.u32 32, %s8
        %s126 = ssub.s32 38, %s125
        %p127 = scmp.lt.s32.totalorder %s126, 32
        %s128 = scalar_select %p127, %s126, 32
        %s129 = smul.u32 128, %s128
        %p130 = scmp.lt.s32.totalorder %s125, 37
        %s131 = scalar_select %p130, %s125, 37
        %s132 = smul.addr %s131, 8
        %s133 = scalar_lea.vmem %s1, %s132
        %s134 = smul.u32 32, %s8
        %s135 = ssub.s32 38, %s134
        %p136 = scmp.lt.s32.totalorder %s135, 32
        %s137 = scalar_select %p136, %s135, 32
        %s138 = smul.u32 128, %s137
      $region24: #{_mse_loss_impl.1} parent=15 // pred_fallthru
        _
    $region16: #{_mse_loss_impl.1} parent=5 // pred_fallthru
      _
    %p139 = scmp.le.s32.totalorder 1, %s8
    %p140 = scmp.lt.s32.totalorder %s8, 3
    %p141 = pnand %p139, %p140
    %p142 = pneg %p141
    // Predicated region
    $region25: #{_mse_loss_impl.1} parent=5 // pred_check
      _
    $region26: #{_mse_loss_impl.1} parent=5 // pred_check_branch
      %144 = sbr.rel (%p141) target = $region28
    $region27: #{_mse_loss_impl.1} parent=5 // pred_region
      %s145 = ssub.s32 %s8, 1
      %s146 = smul.u32 32, %s13
      %s147 = ssub.s32 38, %s146
      %p148 = scmp.lt.s32.totalorder %s147, 32
      %s149 = scalar_select %p148, %s147, 32
      %s150 = smul.u32 128, %s149
      %p151 = scmp.lt.s32.totalorder %s146, 37
      %s152 = scalar_select %p151, %s146, 37
      %s153 = smul.addr %s152, 8
      %s154 = scalar_lea.vmem %s0, %s153
      %p155 = pneg %p34
      %p156 = pneg %p31
      %s157 = smul.u32 32, %s13
      %s158 = ssub.s32 38, %s157
      %p159 = scmp.lt.s32.totalorder %s158, 32
      %s160 = scalar_select %p159, %s158, 32
      %s161 = smul.u32 128, %s160
      %p162 = scmp.lt.s32.totalorder %s157, 37
      %s163 = scalar_select %p162, %s157, 37
      %s164 = smul.addr %s163, 8
      %s165 = scalar_lea.vmem %s1, %s164
      %p166 = pneg %p60
      %p167 = pneg %p57
      %p168 = pneg %p86
      %p169 = pneg %p83
      %p170 = scmp.lt.s32.totalorder %s13, 1
      %s171 = scalar_select %p170, %s13, 1
      %s172 = smul.addr %s171, 8
      %s173 = scalar_lea.vmem %s2, %s172
      %s174 = smul.u32 32, %s13
      %s175 = ssub.s32 38, %s174
      %p176 = scmp.lt.s32.totalorder %s175, 32
      %s177 = scalar_select %p176, %s175, 32
      %s178 = smul.u32 128, %s177
      %p179 = scmp.lt.s32.totalorder %s174, 37
      %s180 = scalar_select %p179, %s174, 37
      %s181 = smul.addr %s180, 8
      %s182 = scalar_lea.vmem %s0, %s181
      %s183 = smul.u32 32, %s13
      %s184 = ssub.s32 38, %s183
      %p185 = scmp.lt.s32.totalorder %s184, 32
      %s186 = scalar_select %p185, %s184, 32
      %s187 = smul.u32 128, %s186
      %s188 = smul.u32 32, %s13
      %s189 = ssub.s32 38, %s188
      %p190 = scmp.lt.s32.totalorder %s189, 32
      %s191 = scalar_select %p190, %s189, 32
      %s192 = smul.u32 128, %s191
      %p193 = scmp.lt.s32.totalorder %s188, 37
      %s194 = scalar_select %p193, %s188, 37
      %s195 = smul.addr %s194, 8
      %s196 = scalar_lea.vmem %s1, %s195
      %s197 = smul.u32 32, %s13
      %s198 = ssub.s32 38, %s197
      %p199 = scmp.lt.s32.totalorder %s198, 32
      %s200 = scalar_select %p199, %s198, 32
      %s201 = smul.u32 128, %s200
      %p202 = scmp.lt.s32.totalorder %s13, 1
      %s203 = scalar_select %p202, %s13, 1
      %s204 = smul.addr %s203, 8
      %s205 = scalar_lea.vmem %s2, %s204
      %s206 = smul.u32 %s13, 256
      %v207 = vld [vmem:[%s182] sm:$0xff]
      %v208 = vld [vmem:[%s182 + $0x8] sm:$0xff]
      %v209 = vld [vmem:[%s182 + $0x10] sm:$0xff]
      %v210 = vld [vmem:[%s182 + $0x18] sm:$0xff]
      %v211 = vld [vmem:[%s182 + $0x20] sm:$0xff]
      %v212 = vld [vmem:[%s182 + $0x28] sm:$0xff]
      %v213 = vld [vmem:[%s182 + $0x30] sm:$0xff]
      %v214 = vld [vmem:[%s182 + $0x38] sm:$0xff]
      %v215 = vld [vmem:[%s182 + $0x40] sm:$0xff]
      %v216 = vld [vmem:[%s182 + $0x48] sm:$0xff]
      %v217 = vld [vmem:[%s182 + $0x50] sm:$0xff]
      %v218 = vld [vmem:[%s182 + $0x58] sm:$0xff]
      %v219 = vld [vmem:[%s182 + $0x60] sm:$0xff]
      %v220 = vld [vmem:[%s182 + $0x68] sm:$0xff]
      %v221 = vld [vmem:[%s182 + $0x70] sm:$0xff]
      %v222 = vld [vmem:[%s182 + $0x78] sm:$0xff]
      %v223 = vld [vmem:[%s182 + $0x80] sm:$0xff]
      %v224 = vld [vmem:[%s182 + $0x88] sm:$0xff]
      %v225 = vld [vmem:[%s182 + $0x90] sm:$0xff]
      %v226 = vld [vmem:[%s182 + $0x98] sm:$0xff]
      %v227 = vld [vmem:[%s182 + $0xa0] sm:$0xff]
      %v228 = vld [vmem:[%s182 + $0xa8] sm:$0xff]
      %v229 = vld [vmem:[%s182 + $0xb0] sm:$0xff]
      %v230 = vld [vmem:[%s182 + $0xb8] sm:$0xff]
      %v231 = vld [vmem:[%s182 + $0xc0] sm:$0xff]
      %v232 = vld [vmem:[%s182 + $0xc8] sm:$0xff]
      %v233 = vld [vmem:[%s182 + $0xd0] sm:$0xff]
      %v234 = vld [vmem:[%s182 + $0xd8] sm:$0xff]
      %v235 = vld [vmem:[%s182 + $0xe0] sm:$0xff]
      %v236 = vld [vmem:[%s182 + $0xe8] sm:$0xff]
      %v237 = vld [vmem:[%s182 + $0xf0] sm:$0xff]
      %v238 = vld [vmem:[%s182 + $0xf8] sm:$0xff]
      %v239 = vld [vmem:[%s196] sm:$0xff]
      %v240 = vld [vmem:[%s196 + $0x8] sm:$0xff]
      %v241 = vld [vmem:[%s196 + $0x10] sm:$0xff]
      %v242 = vld [vmem:[%s196 + $0x18] sm:$0xff]
      %v243 = vld [vmem:[%s196 + $0x20] sm:$0xff]
      %v244 = vld [vmem:[%s196 + $0x28] sm:$0xff]
      %v245 = vld [vmem:[%s196 + $0x30] sm:$0xff]
      %v246 = vld [vmem:[%s196 + $0x38] sm:$0xff]
      %v247 = vld [vmem:[%s196 + $0x40] sm:$0xff]
      %v248 = vld [vmem:[%s196 + $0x48] sm:$0xff]
      %v249 = vld [vmem:[%s196 + $0x50] sm:$0xff]
      %v250 = vld [vmem:[%s196 + $0x58] sm:$0xff]
      %v251 = vld [vmem:[%s196 + $0x60] sm:$0xff]
      %v252 = vld [vmem:[%s196 + $0x68] sm:$0xff]
      %v253 = vld [vmem:[%s196 + $0x70] sm:$0xff]
      %v254 = vld [vmem:[%s196 + $0x78] sm:$0xff]
      %v255 = vld [vmem:[%s196 + $0x80] sm:$0xff]
      %v256 = vld [vmem:[%s196 + $0x88] sm:$0xff]
      %v257 = vld [vmem:[%s196 + $0x90] sm:$0xff]
      %v258 = vld [vmem:[%s196 + $0x98] sm:$0xff]
      %v259 = vld [vmem:[%s196 + $0xa0] sm:$0xff]
      %v260 = vld [vmem:[%s196 + $0xa8] sm:$0xff]
      %v261 = vld [vmem:[%s196 + $0xb0] sm:$0xff]
      %v262 = vld [vmem:[%s196 + $0xb8] sm:$0xff]
      %v263 = vld [vmem:[%s196 + $0xc0] sm:$0xff]
      %v264 = vld [vmem:[%s196 + $0xc8] sm:$0xff]
      %v265 = vld [vmem:[%s196 + $0xd0] sm:$0xff]
      %v266 = vld [vmem:[%s196 + $0xd8] sm:$0xff]
      %v267 = vld [vmem:[%s196 + $0xe0] sm:$0xff]
      %v268 = vld [vmem:[%s196 + $0xe8] sm:$0xff]
      %v269 = vld [vmem:[%s196 + $0xf0] sm:$0xff]
      %v270 = vld [vmem:[%s196 + $0xf8] sm:$0xff]
      %272 = vset.pattern.permute.xlu0 0
      %273 = vperm.xlu0 %272, %v239
      %v274 = vpop.permute.xlu0 %273
      %277 = vset.pattern.permute.xlu0 0
      %278 = vperm.xlu0 %277, %v240
      %v279 = vpop.permute.xlu0 %278
      %282 = vset.pattern.permute.xlu0 0
      %283 = vperm.xlu0 %282, %v241
      %v284 = vpop.permute.xlu0 %283
      %287 = vset.pattern.permute.xlu0 0
      %288 = vperm.xlu0 %287, %v242
      %v289 = vpop.permute.xlu0 %288
      %292 = vset.pattern.permute.xlu0 0
      %293 = vperm.xlu0 %292, %v243
      %v294 = vpop.permute.xlu0 %293
      %297 = vset.pattern.permute.xlu0 0
      %298 = vperm.xlu0 %297, %v244
      %v299 = vpop.permute.xlu0 %298
      %302 = vset.pattern.permute.xlu0 0
      %303 = vperm.xlu0 %302, %v245
      %v304 = vpop.permute.xlu0 %303
      %307 = vset.pattern.permute.xlu0 0
      %308 = vperm.xlu0 %307, %v246
      %v309 = vpop.permute.xlu0 %308
      %312 = vset.pattern.permute.xlu0 0
      %313 = vperm.xlu0 %312, %v247
      %v314 = vpop.permute.xlu0 %313
      %317 = vset.pattern.permute.xlu0 0
      %318 = vperm.xlu0 %317, %v248
      %v319 = vpop.permute.xlu0 %318
      %322 = vset.pattern.permute.xlu0 0
      %323 = vperm.xlu0 %322, %v249
      %v324 = vpop.permute.xlu0 %323
      %327 = vset.pattern.permute.xlu0 0
      %328 = vperm.xlu0 %327, %v250
      %v329 = vpop.permute.xlu0 %328
      %332 = vset.pattern.permute.xlu0 0
      %333 = vperm.xlu0 %332, %v251
      %v334 = vpop.permute.xlu0 %333
      %337 = vset.pattern.permute.xlu0 0
      %338 = vperm.xlu0 %337, %v252
      %v339 = vpop.permute.xlu0 %338
      %342 = vset.pattern.permute.xlu0 0
      %343 = vperm.xlu0 %342, %v253
      %v344 = vpop.permute.xlu0 %343
      %347 = vset.pattern.permute.xlu0 0
      %348 = vperm.xlu0 %347, %v254
      %v349 = vpop.permute.xlu0 %348
      %352 = vset.pattern.permute.xlu0 0
      %353 = vperm.xlu0 %352, %v255
      %v354 = vpop.permute.xlu0 %353
      %357 = vset.pattern.permute.xlu0 0
      %358 = vperm.xlu0 %357, %v256
      %v359 = vpop.permute.xlu0 %358
      %362 = vset.pattern.permute.xlu0 0
      %363 = vperm.xlu0 %362, %v257
      %v364 = vpop.permute.xlu0 %363
      %367 = vset.pattern.permute.xlu0 0
      %368 = vperm.xlu0 %367, %v258
      %v369 = vpop.permute.xlu0 %368
      %372 = vset.pattern.permute.xlu0 0
      %373 = vperm.xlu0 %372, %v259
      %v374 = vpop.permute.xlu0 %373
      %377 = vset.pattern.permute.xlu0 0
      %378 = vperm.xlu0 %377, %v260
      %v379 = vpop.permute.xlu0 %378
      %382 = vset.pattern.permute.xlu0 0
      %383 = vperm.xlu0 %382, %v261
      %v384 = vpop.permute.xlu0 %383
      %387 = vset.pattern.permute.xlu0 0
      %388 = vperm.xlu0 %387, %v262
      %v389 = vpop.permute.xlu0 %388
      %392 = vset.pattern.permute.xlu0 0
      %393 = vperm.xlu0 %392, %v263
      %v394 = vpop.permute.xlu0 %393
      %397 = vset.pattern.permute.xlu0 0
      %398 = vperm.xlu0 %397, %v264
      %v399 = vpop.permute.xlu0 %398
      %402 = vset.pattern.permute.xlu0 0
      %403 = vperm.xlu0 %402, %v265
      %v404 = vpop.permute.xlu0 %403
      %407 = vset.pattern.permute.xlu0 0
      %408 = vperm.xlu0 %407, %v266
      %v409 = vpop.permute.xlu0 %408
      %412 = vset.pattern.permute.xlu0 0
      %413 = vperm.xlu0 %412, %v267
      %v414 = vpop.permute.xlu0 %413
      %417 = vset.pattern.permute.xlu0 0
      %418 = vperm.xlu0 %417, %v268
      %v419 = vpop.permute.xlu0 %418
      %422 = vset.pattern.permute.xlu0 0
      %423 = vperm.xlu0 %422, %v269
      %v424 = vpop.permute.xlu0 %423
      %427 = vset.pattern.permute.xlu0 0
      %428 = vperm.xlu0 %427, %v270
      %v429 = vpop.permute.xlu0 %428
      %v431 = vsub.f32 %v207, %v274
      %v432 = vsub.f32 %v208, %v279
      %v433 = vsub.f32 %v209, %v284
      %v434 = vsub.f32 %v210, %v289
      %v435 = vsub.f32 %v211, %v294
      %v436 = vsub.f32 %v212, %v299
      %v437 = vsub.f32 %v213, %v304
      %v438 = vsub.f32 %v214, %v309
      %v439 = vsub.f32 %v215, %v314
      %v440 = vsub.f32 %v216, %v319
      %v441 = vsub.f32 %v217, %v324
      %v442 = vsub.f32 %v218, %v329
      %v443 = vsub.f32 %v219, %v334
      %v444 = vsub.f32 %v220, %v339
      %v445 = vsub.f32 %v221, %v344
      %v446 = vsub.f32 %v222, %v349
      %v447 = vsub.f32 %v223, %v354
      %v448 = vsub.f32 %v224, %v359
      %v449 = vsub.f32 %v225, %v364
      %v450 = vsub.f32 %v226, %v369
      %v451 = vsub.f32 %v227, %v374
      %v452 = vsub.f32 %v228, %v379
      %v453 = vsub.f32 %v229, %v384
      %v454 = vsub.f32 %v230, %v389
      %v455 = vsub.f32 %v231, %v394
      %v456 = vsub.f32 %v232, %v399
      %v457 = vsub.f32 %v233, %v404
      %v458 = vsub.f32 %v234, %v409
      %v459 = vsub.f32 %v235, %v414
      %v460 = vsub.f32 %v236, %v419
      %v461 = vsub.f32 %v237, %v424
      %v462 = vsub.f32 %v238, %v429
      %v463 = vmul.f32 %v431, %v431
      %v464 = vmul.f32 %v432, %v432
      %v465 = vmul.f32 %v433, %v433
      %v466 = vmul.f32 %v434, %v434
      %v467 = vmul.f32 %v435, %v435
      %v468 = vmul.f32 %v436, %v436
      %v469 = vmul.f32 %v437, %v437
      %v470 = vmul.f32 %v438, %v438
      %v471 = vmul.f32 %v439, %v439
      %v472 = vmul.f32 %v440, %v440
      %v473 = vmul.f32 %v441, %v441
      %v474 = vmul.f32 %v442, %v442
      %v475 = vmul.f32 %v443, %v443
      %v476 = vmul.f32 %v444, %v444
      %v477 = vmul.f32 %v445, %v445
      %v478 = vmul.f32 %v446, %v446
      %v479 = vmul.f32 %v447, %v447
      %v480 = vmul.f32 %v448, %v448
      %v481 = vmul.f32 %v449, %v449
      %v482 = vmul.f32 %v450, %v450
      %v483 = vmul.f32 %v451, %v451
      %v484 = vmul.f32 %v452, %v452
      %v485 = vmul.f32 %v453, %v453
      %v486 = vmul.f32 %v454, %v454
      %v487 = vmul.f32 %v455, %v455
      %v488 = vmul.f32 %v456, %v456
      %v489 = vmul.f32 %v457, %v457
      %v490 = vmul.f32 %v458, %v458
      %v491 = vmul.f32 %v459, %v459
      %v492 = vmul.f32 %v460, %v460
      %v493 = vmul.f32 %v461, %v461
      %v494 = vmul.f32 %v462, %v462
      %s495 = sadd.s32 %s206, 0
      %v496 = vlaneseq
      %v497 = vshrl.u32 %v496, 7
      %v498 = vadd.s32 %v497, 8
      %v499 = vadd.s32 %v497, 16
      %v500 = vadd.s32 %v497, 24
      %v501 = vadd.s32 %v497, 32
      %v502 = vadd.s32 %v497, 40
      %v503 = vadd.s32 %v497, 48
      %v504 = vadd.s32 %v497, 56
      %v505 = vadd.s32 %v497, 64
      %v506 = vadd.s32 %v497, 72
      %v507 = vadd.s32 %v497, 80
      %v508 = vadd.s32 %v497, 88
      %v509 = vadd.s32 %v497, 96
      %v510 = vadd.s32 %v497, 104
      %v511 = vadd.s32 %v497, 112
      %v512 = vadd.s32 %v497, 120
      %v513 = vadd.s32 %v497, 128
      %v514 = vadd.s32 %v497, 136
      %v515 = vadd.s32 %v497, 144
      %v516 = vadd.s32 %v497, 152
      %v517 = vadd.s32 %v497, 160
      %v518 = vadd.s32 %v497, 168
      %v519 = vadd.s32 %v497, 176
      %v520 = vadd.s32 %v497, 184
      %v521 = vadd.s32 %v497, 192
      %v522 = vadd.s32 %v497, 200
      %v523 = vadd.s32 %v497, 208
      %v524 = vadd.s32 %v497, 216
      %v525 = vadd.s32 %v497, 224
      %v526 = vadd.s32 %v497, 232
      %v527 = vadd.s32 %v497, 240
      %v528 = vadd.s32 %v497, 248
      %v529 = vstv %s495
      %v530 = vadd.s32 %v529, %v497
      %v531 = vadd.s32 %v529, %v498
      %v532 = vadd.s32 %v529, %v499
      %v533 = vadd.s32 %v529, %v500
      %v534 = vadd.s32 %v529, %v501
      %v535 = vadd.s32 %v529, %v502
      %v536 = vadd.s32 %v529, %v503
      %v537 = vadd.s32 %v529, %v504
      %v538 = vadd.s32 %v529, %v505
      %v539 = vadd.s32 %v529, %v506
      %v540 = vadd.s32 %v529, %v507
      %v541 = vadd.s32 %v529, %v508
      %v542 = vadd.s32 %v529, %v509
      %v543 = vadd.s32 %v529, %v510
      %v544 = vadd.s32 %v529, %v511
      %v545 = vadd.s32 %v529, %v512
      %v546 = vadd.s32 %v529, %v513
      %v547 = vadd.s32 %v529, %v514
      %v548 = vadd.s32 %v529, %v515
      %v549 = vadd.s32 %v529, %v516
      %v550 = vadd.s32 %v529, %v517
      %v551 = vadd.s32 %v529, %v518
      %v552 = vadd.s32 %v529, %v519
      %v553 = vadd.s32 %v529, %v520
      %v554 = vadd.s32 %v529, %v521
      %v555 = vadd.s32 %v529, %v522
      %v556 = vadd.s32 %v529, %v523
      %v557 = vadd.s32 %v529, %v524
      %v558 = vadd.s32 %v529, %v525
      %v559 = vadd.s32 %v529, %v526
      %v560 = vadd.s32 %v529, %v527
      %v561 = vadd.s32 %v529, %v528
      %vm562 = vcmp.ge.s32.totalorder %v530, 6
      %vm563 = vcmp.ge.s32.totalorder %v531, 6
      %vm564 = vcmp.ge.s32.totalorder %v532, 6
      %vm565 = vcmp.ge.s32.totalorder %v533, 6
      %vm566 = vcmp.ge.s32.totalorder %v534, 6
      %vm567 = vcmp.ge.s32.totalorder %v535, 6
      %vm568 = vcmp.ge.s32.totalorder %v536, 6
      %vm569 = vcmp.ge.s32.totalorder %v537, 6
      %vm570 = vcmp.ge.s32.totalorder %v538, 6
      %vm571 = vcmp.ge.s32.totalorder %v539, 6
      %vm572 = vcmp.ge.s32.totalorder %v540, 6
      %vm573 = vcmp.ge.s32.totalorder %v541, 6
      %vm574 = vcmp.ge.s32.totalorder %v542, 6
      %vm575 = vcmp.ge.s32.totalorder %v543, 6
      %vm576 = vcmp.ge.s32.totalorder %v544, 6
      %vm577 = vcmp.ge.s32.totalorder %v545, 6
      %vm578 = vcmp.ge.s32.totalorder %v546, 6
      %vm579 = vcmp.ge.s32.totalorder %v547, 6
      %vm580 = vcmp.ge.s32.totalorder %v548, 6
      %vm581 = vcmp.ge.s32.totalorder %v549, 6
      %vm582 = vcmp.ge.s32.totalorder %v550, 6
      %vm583 = vcmp.ge.s32.totalorder %v551, 6
      %vm584 = vcmp.ge.s32.totalorder %v552, 6
      %vm585 = vcmp.ge.s32.totalorder %v553, 6
      %vm586 = vcmp.ge.s32.totalorder %v554, 6
      %vm587 = vcmp.ge.s32.totalorder %v555, 6
      %vm588 = vcmp.ge.s32.totalorder %v556, 6
      %vm589 = vcmp.ge.s32.totalorder %v557, 6
      %vm590 = vcmp.ge.s32.totalorder %v558, 6
      %vm591 = vcmp.ge.s32.totalorder %v559, 6
      %vm592 = vcmp.ge.s32.totalorder %v560, 6
      %vm593 = vcmp.ge.s32.totalorder %v561, 6
      %vm594 = vcmp.lt.s32.totalorder %v530, 300
      %vm595 = vcmp.lt.s32.totalorder %v531, 300
      %vm596 = vcmp.lt.s32.totalorder %v532, 300
      %vm597 = vcmp.lt.s32.totalorder %v533, 300
      %vm598 = vcmp.lt.s32.totalorder %v534, 300
      %vm599 = vcmp.lt.s32.totalorder %v535, 300
      %vm600 = vcmp.lt.s32.totalorder %v536, 300
      %vm601 = vcmp.lt.s32.totalorder %v537, 300
      %vm602 = vcmp.lt.s32.totalorder %v538, 300
      %vm603 = vcmp.lt.s32.totalorder %v539, 300
      %vm604 = vcmp.lt.s32.totalorder %v540, 300
      %vm605 = vcmp.lt.s32.totalorder %v541, 300
      %vm606 = vcmp.lt.s32.totalorder %v542, 300
      %vm607 = vcmp.lt.s32.totalorder %v543, 300
      %vm608 = vcmp.lt.s32.totalorder %v544, 300
      %vm609 = vcmp.lt.s32.totalorder %v545, 300
      %vm610 = vcmp.lt.s32.totalorder %v546, 300
      %vm611 = vcmp.lt.s32.totalorder %v547, 300
      %vm612 = vcmp.lt.s32.totalorder %v548, 300
      %vm613 = vcmp.lt.s32.totalorder %v549, 300
      %vm614 = vcmp.lt.s32.totalorder %v550, 300
      %vm615 = vcmp.lt.s32.totalorder %v551, 300
      %vm616 = vcmp.lt.s32.totalorder %v552, 300
      %vm617 = vcmp.lt.s32.totalorder %v553, 300
      %vm618 = vcmp.lt.s32.totalorder %v554, 300
      %vm619 = vcmp.lt.s32.totalorder %v555, 300
      %vm620 = vcmp.lt.s32.totalorder %v556, 300
      %vm621 = vcmp.lt.s32.totalorder %v557, 300
      %vm622 = vcmp.lt.s32.totalorder %v558, 300
      %vm623 = vcmp.lt.s32.totalorder %v559, 300
      %vm624 = vcmp.lt.s32.totalorder %v560, 300
      %vm625 = vcmp.lt.s32.totalorder %v561, 300
      %vm626 = vmand %vm562, %vm594
      %vm627 = vmand %vm563, %vm595
      %vm628 = vmand %vm564, %vm596
      %vm629 = vmand %vm565, %vm597
      %vm630 = vmand %vm566, %vm598
      %vm631 = vmand %vm567, %vm599
      %vm632 = vmand %vm568, %vm600
      %vm633 = vmand %vm569, %vm601
      %vm634 = vmand %vm570, %vm602
      %vm635 = vmand %vm571, %vm603
      %vm636 = vmand %vm572, %vm604
      %vm637 = vmand %vm573, %vm605
      %vm638 = vmand %vm574, %vm606
      %vm639 = vmand %vm575, %vm607
      %vm640 = vmand %vm576, %vm608
      %vm641 = vmand %vm577, %vm609
      %vm642 = vmand %vm578, %vm610
      %vm643 = vmand %vm579, %vm611
      %vm644 = vmand %vm580, %vm612
      %vm645 = vmand %vm581, %vm613
      %vm646 = vmand %vm582, %vm614
      %vm647 = vmand %vm583, %vm615
      %vm648 = vmand %vm584, %vm616
      %vm649 = vmand %vm585, %vm617
      %vm650 = vmand %vm586, %vm618
      %vm651 = vmand %vm587, %vm619
      %vm652 = vmand %vm588, %vm620
      %vm653 = vmand %vm589, %vm621
      %vm654 = vmand %vm590, %vm622
      %vm655 = vmand %vm591, %vm623
      %vm656 = vmand %vm592, %vm624
      %vm657 = vmand %vm593, %vm625
      %v658 = vsel %vm626, %v463, 0.0
      %v659 = vsel %vm627, %v464, 0.0
      %v660 = vsel %vm628, %v465, 0.0
      %v661 = vsel %vm629, %v466, 0.0
      %v662 = vsel %vm630, %v467, 0.0
      %v663 = vsel %vm631, %v468, 0.0
      %v664 = vsel %vm632, %v469, 0.0
      %v665 = vsel %vm633, %v470, 0.0
      %v666 = vsel %vm634, %v471, 0.0
      %v667 = vsel %vm635, %v472, 0.0
      %v668 = vsel %vm636, %v473, 0.0
      %v669 = vsel %vm637, %v474, 0.0
      %v670 = vsel %vm638, %v475, 0.0
      %v671 = vsel %vm639, %v476, 0.0
      %v672 = vsel %vm640, %v477, 0.0
      %v673 = vsel %vm641, %v478, 0.0
      %v674 = vsel %vm642, %v479, 0.0
      %v675 = vsel %vm643, %v480, 0.0
      %v676 = vsel %vm644, %v481, 0.0
      %v677 = vsel %vm645, %v482, 0.0
      %v678 = vsel %vm646, %v483, 0.0
      %v679 = vsel %vm647, %v484, 0.0
      %v680 = vsel %vm648, %v485, 0.0
      %v681 = vsel %vm649, %v486, 0.0
      %v682 = vsel %vm650, %v487, 0.0
      %v683 = vsel %vm651, %v488, 0.0
      %v684 = vsel %vm652, %v489, 0.0
      %v685 = vsel %vm653, %v490, 0.0
      %v686 = vsel %vm654, %v491, 0.0
      %v687 = vsel %vm655, %v492, 0.0
      %v688 = vsel %vm656, %v493, 0.0
      %v689 = vsel %vm657, %v494, 0.0
      %vm690 = vcmask 64512
      %v691 = vsel %vm690, %v658, 0.0
      %v692 = vsel %vm690, %v659, 0.0
      %v693 = vadd.f32 %v691, %v692
      %v694 = vsel %vm690, %v660, 0.0
      %v695 = vadd.f32 %v693, %v694
      %v696 = vsel %vm690, %v661, 0.0
      %v697 = vadd.f32 %v695, %v696
      %v698 = vsel %vm690, %v662, 0.0
      %v699 = vadd.f32 %v697, %v698
      %v700 = vsel %vm690, %v663, 0.0
      %v701 = vadd.f32 %v699, %v700
      %v702 = vsel %vm690, %v664, 0.0
      %v703 = vadd.f32 %v701, %v702
      %v704 = vsel %vm690, %v665, 0.0
      %v705 = vadd.f32 %v703, %v704
      %v706 = vsel %vm690, %v666, 0.0
      %v707 = vadd.f32 %v705, %v706
      %v708 = vsel %vm690, %v667, 0.0
      %v709 = vadd.f32 %v707, %v708
      %v710 = vsel %vm690, %v668, 0.0
      %v711 = vadd.f32 %v709, %v710
      %v712 = vsel %vm690, %v669, 0.0
      %v713 = vadd.f32 %v711, %v712
      %v714 = vsel %vm690, %v670, 0.0
      %v715 = vadd.f32 %v713, %v714
      %v716 = vsel %vm690, %v671, 0.0
      %v717 = vadd.f32 %v715, %v716
      %v718 = vsel %vm690, %v672, 0.0
      %v719 = vadd.f32 %v717, %v718
      %v720 = vsel %vm690, %v673, 0.0
      %v721 = vadd.f32 %v719, %v720
      %v722 = vsel %vm690, %v674, 0.0
      %v723 = vadd.f32 %v721, %v722
      %v724 = vsel %vm690, %v675, 0.0
      %v725 = vadd.f32 %v723, %v724
      %v726 = vsel %vm690, %v676, 0.0
      %v727 = vadd.f32 %v725, %v726
      %v728 = vsel %vm690, %v677, 0.0
      %v729 = vadd.f32 %v727, %v728
      %v730 = vsel %vm690, %v678, 0.0
      %v731 = vadd.f32 %v729, %v730
      %v732 = vsel %vm690, %v679, 0.0
      %v733 = vadd.f32 %v731, %v732
      %v734 = vsel %vm690, %v680, 0.0
      %v735 = vadd.f32 %v733, %v734
      %v736 = vsel %vm690, %v681, 0.0
      %v737 = vadd.f32 %v735, %v736
      %v738 = vsel %vm690, %v682, 0.0
      %v739 = vadd.f32 %v737, %v738
      %v740 = vsel %vm690, %v683, 0.0
      %v741 = vadd.f32 %v739, %v740
      %v742 = vsel %vm690, %v684, 0.0
      %v743 = vadd.f32 %v741, %v742
      %v744 = vsel %vm690, %v685, 0.0
      %v745 = vadd.f32 %v743, %v744
      %v746 = vsel %vm690, %v686, 0.0
      %v747 = vadd.f32 %v745, %v746
      %v748 = vsel %vm690, %v687, 0.0
      %v749 = vadd.f32 %v747, %v748
      %v750 = vsel %vm690, %v688, 0.0
      %v751 = vadd.f32 %v749, %v750
      %v752 = vsel %vm690, %v689, 0.0
      %v753 = vadd.f32 %v751, %v752
      %v754 = vadd.f32 %v753, 0.0
      %755 = vst.msk [vmem:[%s205] sm:$0xff] %vm690, %v754
      %p756 = scmp.lt.s32.totalorder %s13, 1
      %s757 = scalar_select %p756, %s13, 1
      %s758 = smul.addr %s757, 8
      %s759 = scalar_lea.vmem %s2, %s758
      // Predicated region
      $region29: #{_mse_loss_impl.1} parent=27 // pred_check
        %p760 = pneg %p83
      $region30: #{_mse_loss_impl.1} parent=27 // pred_check_branch
        %762 = sbr.rel (%p760) target = $region32
      $region31: #{_mse_loss_impl.1} parent=27 // pred_region
        _
      $region32: #{_mse_loss_impl.1} parent=27 // pred_fallthru
        _
    $region28: #{_mse_loss_impl.1} parent=5 // pred_fallthru
      _
    %p763 = scmp.le.s32.totalorder 2, %s8
    // Predicated region
    $region33: #{_mse_loss_impl.1} parent=5 // pred_check
      %p764 = pneg %p763
    $region34: #{_mse_loss_impl.1} parent=5 // pred_check_branch
      %766 = sbr.rel (%p764) target = $region36
    $region35: #{_mse_loss_impl.1} parent=5 // pred_region
      %s767 = ssub.s32 %s8, 2
      // Predicated region
      $region37: #{_mse_loss_impl.1} parent=35 // pred_check
        %p768 = pneg %p89
      $region38: #{_mse_loss_impl.1} parent=35 // pred_check_branch
        %770 = sbr.rel (%p768) target = $region40
      $region39: #{_mse_loss_impl.1} parent=35 // pred_region
        %p771 = scmp.lt.s32.totalorder %s14, 1
        %s772 = scalar_select %p771, %s14, 1
        %s773 = smul.addr %s772, 8
        %s774 = scalar_lea.vmem %s2, %s773
      $region40: #{_mse_loss_impl.1} parent=35 // pred_fallthru
        _
    $region36: #{_mse_loss_impl.1} parent=5 // pred_fallthru
      _
  $region6: #{_mse_loss_impl.1} parent=0 // loop_footer
    %s12 = sadd.s32 1, %s8
  $region7: #{_mse_loss_impl.1} parent=0 // loop_footer_branch
    %7 = sbr.rel target = $region3
  $region8: #{_mse_loss_impl.1} parent=0 // loop_exit
    _

</llo_original>
